<compile_context>
chip_gen: v6e
topology: v6e:2x2x1
jax: 0.10.0
libtpu: 0.0.40
codegen_flags: <defaults>
</compile_context>

<pallas_src>
import functools

import jax
import jax.numpy as jnp
from jax import lax
from jax.experimental import pallas as pl
from jax.experimental.pallas import tpu as pltpu


def _stg_kernel(probs_ref, feats_ref, out_ref, m_ref, s_ref, acc_ref, *,
                scale, num_groups, num_chunks):
    # grid = (B, G, C): B parallel; G (groups) and C (HW chunks) are reductions,
    # iterated last so the per-(b) output block and per-(b,g) scratch stay
    # VMEM-resident across them.
    g = pl.program_id(1)
    c = pl.program_id(2)

    @pl.when(jnp.logical_and(g == 0, c == 0))
    def _init_out():
        out_ref[...] = jnp.zeros_like(out_ref)

    @pl.when(c == 0)
    def _init_group():
        m_ref[...] = jnp.full_like(m_ref, -jnp.inf)
        s_ref[...] = jnp.zeros_like(s_ref)
        acc_ref[...] = jnp.zeros_like(acc_ref)

    p = probs_ref[0, 0].astype(jnp.float32)                    # (K, HWc)
    if scale != 1.0:                                           # compile-time const
        p = p * scale
    f = feats_ref[0, 0]                                        # (Cf, HWc), in dtype

    # Online (chunked) softmax statistics -- exact, also for a single chunk.
    m_old = m_ref[...]                                         # (K, 1)
    m_new = jnp.maximum(m_old, jnp.max(p, axis=-1, keepdims=True))
    e = jnp.exp(p - m_new)                                     # (K, HWc) f32
    corr = jnp.exp(m_old - m_new)                              # (K, 1); 0 on chunk 0

    s_ref[...] = s_ref[...] * corr + jnp.sum(e, axis=-1, keepdims=True)

    # Un-normalized context: contract over HW directly (no feats transpose).
    part = lax.dot_general(
        e.astype(f.dtype), f,
        dimension_numbers=(((1,), (1,)), ((), ())),
        preferred_element_type=jnp.float32)                    # (K, Cf)
    acc_ref[...] = acc_ref[...] * corr + part
    m_ref[...] = m_new

    @pl.when(c == num_chunks - 1)
    def _end_group():
        # Normalize once on the small (K, Cf) tile, accumulate into output.
        out_ref[0] += acc_ref[...] * (1.0 / s_ref[...])

    @pl.when(jnp.logical_and(g == num_groups - 1, c == num_chunks - 1))
    def _finalize():
        out_ref[0] = out_ref[0] * (1.0 / num_groups)


def _pick_hw_chunk(HW, K, Cf, itemsize, target_bytes=12 << 20):
    """Largest HW chunk (multiple of 128 dividing HW) whose double-buffered
    probs+feats tiles fit in target_bytes; HW itself if not 128-divisible
    (block must then equal the full dim per the (8,128) rule)."""
    if HW % 128 != 0:
        return HW
    per_hw = 2 * (K + Cf) * itemsize          # double-buffered bytes per HW column
    divisors = [d for d in range(128, HW + 1, 128) if HW % d == 0]
    fitting = [d for d in divisors if d * per_hw <= target_bytes]
    return max(fitting) if fitting else min(divisors)


def spatial_temporal_gather(feats, probs, clip_num, *, scale=1.0, hw_chunk=None):
    """feats: (G*B, Cf, H, W), probs: (G*B, K, H, W)  -> (B, Cf, K, 1)."""
    G = clip_num + 1
    Bt, K, H, W = probs.shape
    Bt2, Cf, H2, W2 = feats.shape
    assert Bt == Bt2 and H == H2 and W == W2 and Bt % G == 0
    B = Bt // G
    HW = H * W

    # Free reshapes of contiguous NCHW -- no transposes of the big feats tensor.
    probs_k = probs.reshape(G, B, K, HW)       # (G, B, K,  HW)
    feats_k = feats.reshape(G, B, Cf, HW)      # (G, B, Cf, HW)

    itemsize = max(jnp.dtype(probs.dtype).itemsize, jnp.dtype(feats.dtype).itemsize)
    if hw_chunk is None:
        hw_chunk = _pick_hw_chunk(HW, K, Cf, itemsize)
    assert HW % hw_chunk == 0 and (hw_chunk == HW or hw_chunk % 128 == 0)
    num_chunks = HW // hw_chunk

    kernel = functools.partial(_stg_kernel, scale=float(scale),
                               num_groups=G, num_chunks=num_chunks)

    # VMEM budget hint: double-buffered input tiles + accumulators + slack,
    # kept under 48 MiB so it is valid on v7x (64 MiB physical) as well as
    # raising the default scoped limit on v5e/v6e when tiles are large.
    vmem_bytes = (2 * (K + Cf) * hw_chunk * itemsize   # pipelined input tiles
                  + 2 * K * Cf * 4                     # out tile + acc scratch
                  + 4 * K * 4                          # m / s scratch
                  + (4 << 20))                         # headroom
    vmem_limit = int(min(max(vmem_bytes, 16 << 20), 48 << 20))

    out = pl.pallas_call(
        kernel,
        out_shape=jax.ShapeDtypeStruct((B, K, Cf), jnp.float32),
        grid_spec=pltpu.PrefetchScalarGridSpec(
            num_scalar_prefetch=0,
            grid=(B, G, num_chunks),
            in_specs=[
                pl.BlockSpec((1, 1, K, hw_chunk), lambda b, g, c: (g, b, 0, c)),
                pl.BlockSpec((1, 1, Cf, hw_chunk), lambda b, g, c: (g, b, 0, c)),
            ],
            out_specs=pl.BlockSpec((1, K, Cf), lambda b, g, c: (b, 0, 0)),
            scratch_shapes=[
                pltpu.VMEM((K, 1), jnp.float32),   # running max  m
                pltpu.VMEM((K, 1), jnp.float32),   # running sum  s
                pltpu.VMEM((K, Cf), jnp.float32),  # per-group un-normalized acc
            ],
        ),
        compiler_params=pltpu.CompilerParams(
            dimension_semantics=("parallel", "arbitrary", "arbitrary"),
            vmem_limit_bytes=vmem_limit,
        ),
    )(probs_k, feats_k)

    # (B, K, Cf) -> (B, Cf, K, 1): tiny, lane-sparse transpose -- leave to XLA.
    return out.transpose(0, 2, 1)[..., None]


def _reference(feats, probs, clip_num, scale=1.0):
    G = clip_num + 1
    Bt, K, H, W = probs.shape
    Cf = feats.shape[1]
    B = Bt // G
    p = probs.reshape(G, B, K, H * W)
    f = feats.reshape(G, B, Cf, H * W).transpose(0, 1, 3, 2)
    p = jax.nn.softmax(scale * p, axis=-1)
    ctx = jnp.einsum('gbks,gbsc->gbkc', p, f)
    ctx = jnp.mean(ctx, axis=0)                # (B, K, Cf)
    return ctx.transpose(0, 2, 1)[..., None]   # (B, Cf, K, 1)


def _run_case(key, clip_num, B, K, Cf, H, W, scale, hw_chunk=None):
    G = clip_num + 1
    k1, k2 = jax.random.split(key)
    probs = jax.random.normal(k1, (G * B, K, H, W), dtype=jnp.float32)
    feats = jax.random.normal(k2, (G * B, Cf, H, W), dtype=jnp.float32)

    out = spatial_temporal_gather(feats, probs, clip_num, scale=scale,
                                  hw_chunk=hw_chunk)
    out = jax.block_until_ready(out)

    ref = _reference(feats, probs, clip_num, scale=scale)
    assert out.shape == (B, Cf, K, 1), out.shape
    assert jnp.allclose(out, ref, atol=1e-4, rtol=1e-4), \
        float(jnp.max(jnp.abs(out - ref)))


if __name__ == "__main__":
    # No learnable parameters in this module (relu / cls_num unused in forward).
    key = jax.random.PRNGKey(0)
    k_a, k_b = jax.random.split(key)

    # Case 1: small shapes, single HW chunk (HW=64 < 128 -> full-extent block).
    _run_case(k_a, clip_num=1, B=2, K=4, Cf=16, H=8, W=8, scale=1.0)

    # Case 2: exercise the chunked online-softmax path (HW=256, chunk=128).
    _run_case(k_b, clip_num=2, B=2, K=8, Cf=32, H=16, W=16, scale=0.5,
              hw_chunk=128)

    print("KERNEL_OK")
</pallas_src>

<mosaic_0001>
module attributes {stable_mosaic.version = 11 : i64} {
  func.func @_stg_kernel(%arg0: i32, %arg1: i32, %arg2: i32, %arg3: memref<1x1x4x64xf32, #tpu.memory_space<vmem>>, %arg4: memref<1x1x16x64xf32, #tpu.memory_space<vmem>>, %arg5: memref<1x4x16xf32, #tpu.memory_space<vmem>>, %arg6: memref<4x1xf32, #tpu.memory_space<vmem>>, %arg7: memref<4x1xf32, #tpu.memory_space<vmem>>, %arg8: memref<4x16xf32, #tpu.memory_space<vmem>>) attributes {dimension_semantics = [#tpu.dimension_semantics<parallel>, #tpu.dimension_semantics<arbitrary>, #tpu.dimension_semantics<arbitrary>], iteration_bounds = array<i64: 2, 2, 1>, scalar_prefetch = 0 : i64, scratch_operands = 3 : i64, tpu.core_type = #tpu.core_type<tc>, window_params = [{transform_indices = @transform_0, window_bounds = array<i64: 1, 1, 4, 64>}, {transform_indices = @transform_1, window_bounds = array<i64: 1, 1, 16, 64>}, {transform_indices = @transform_2, window_bounds = array<i64: 1, 4, 16>}]} {
    %c0_i32 = arith.constant 0 : i32
    %0 = arith.cmpi eq, %arg1, %c0_i32 : i32
    %c0_i32_0 = arith.constant 0 : i32
    %1 = arith.cmpi eq, %arg2, %c0_i32_0 : i32
    %2 = arith.andi %0, %1 : i1
    %3 = arith.extui %2 : i1 to i32
    %c0_i32_1 = arith.constant 0 : i32
    %4 = arith.cmpi ne, %3, %c0_i32_1 : i32
    scf.if %4 {
      %cst_29 = arith.constant 0.000000e+00 : f32
      %42 = vector.broadcast %cst_29 : f32 to vector<1x4x16xf32>
      %c0_30 = arith.constant 0 : index
      %c0_31 = arith.constant 0 : index
      %c0_32 = arith.constant 0 : index
      %43 = vector.load %arg5[%c0_30, %c0_31, %c0_32] : memref<1x4x16xf32, #tpu.memory_space<vmem>>, vector<1x4x16xf32>
      tpu.vector_store %arg5[%c0_30, %c0_31, %c0_32], %42 {strides = array<i32>} : memref<1x4x16xf32, #tpu.memory_space<vmem>>, vector<1x4x16xf32>,
    } else {
    }
    %c0_i32_2 = arith.constant 0 : i32
    %5 = arith.cmpi eq, %arg2, %c0_i32_2 : i32
    %6 = arith.extui %5 : i1 to i32
    %c0_i32_3 = arith.constant 0 : i32
    %7 = arith.cmpi ne, %6, %c0_i32_3 : i32
    scf.if %7 {
      %cst_29 = arith.constant 0xFF800000 : f32
      %42 = vector.broadcast %cst_29 : f32 to vector<4x1xf32>
      %c0_30 = arith.constant 0 : index
      %c0_31 = arith.constant 0 : index
      %43 = vector.load %arg6[%c0_30, %c0_31] : memref<4x1xf32, #tpu.memory_space<vmem>>, vector<4x1xf32>
      tpu.vector_store %arg6[%c0_30, %c0_31], %42 {strides = array<i32>} : memref<4x1xf32, #tpu.memory_space<vmem>>, vector<4x1xf32>,
      %cst_32 = arith.constant 0.000000e+00 : f32
      %44 = vector.broadcast %cst_32 : f32 to vector<4x1xf32>
      %c0_33 = arith.constant 0 : index
      %c0_34 = arith.constant 0 : index
      %45 = vector.load %arg7[%c0_33, %c0_34] : memref<4x1xf32, #tpu.memory_space<vmem>>, vector<4x1xf32>
      tpu.vector_store %arg7[%c0_33, %c0_34], %44 {strides = array<i32>} : memref<4x1xf32, #tpu.memory_space<vmem>>, vector<4x1xf32>,
      %cst_35 = arith.constant 0.000000e+00 : f32
      %46 = vector.broadcast %cst_35 : f32 to vector<4x16xf32>
      %c0_36 = arith.constant 0 : index
      %c0_37 = arith.constant 0 : index
      %47 = vector.load %arg8[%c0_36, %c0_37] : memref<4x16xf32, #tpu.memory_space<vmem>>, vector<4x16xf32>
      tpu.vector_store %arg8[%c0_36, %c0_37], %46 {strides = array<i32>} : memref<4x16xf32, #tpu.memory_space<vmem>>, vector<4x16xf32>,
    } else {
    }
    %c0 = arith.constant 0 : index
    %c0_4 = arith.constant 0 : index
    %c0_5 = arith.constant 0 : index
    %c0_6 = arith.constant 0 : index
    %8 = vector.load %arg3[%c0, %c0_4, %c0_5, %c0_6] : memref<1x1x4x64xf32, #tpu.memory_space<vmem>>, vector<1x1x4x64xf32>
    %9 = vector.shape_cast %8 : vector<1x1x4x64xf32> to vector<4x64xf32>
    %c0_7 = arith.constant 0 : index
    %c0_8 = arith.constant 0 : index
    %c0_9 = arith.constant 0 : index
    %c0_10 = arith.constant 0 : index
    %10 = vector.load %arg4[%c0_7, %c0_8, %c0_9, %c0_10] : memref<1x1x16x64xf32, #tpu.memory_space<vmem>>, vector<1x1x16x64xf32>
    %11 = vector.shape_cast %10 : vector<1x1x16x64xf32> to vector<16x64xf32>
    %c0_11 = arith.constant 0 : index
    %c0_12 = arith.constant 0 : index
    %12 = vector.load %arg6[%c0_11, %c0_12] : memref<4x1xf32, #tpu.memory_space<vmem>>, vector<4x1xf32>
    %cst = arith.constant dense<0xFF800000> : vector<4xf32>
    %13 = vector.multi_reduction <maximumf>, %9, %cst [1] : vector<4x64xf32> to vector<4xf32>
    %14 = vector.shape_cast %13 : vector<4xf32> to vector<4x1xf32>
    %15 = arith.maximumf %12, %14 : vector<4x1xf32>
    %16 = vector.broadcast %15 : vector<4x1xf32> to vector<4x64xf32>
    %17 = arith.subf %9, %16 : vector<4x64xf32>
    %18 = math.exp %17 : vector<4x64xf32>
    %19 = arith.subf %12, %15 : vector<4x1xf32>
    %20 = math.exp %19 : vector<4x1xf32>
    %c0_13 = arith.constant 0 : index
    %c0_14 = arith.constant 0 : index
    %21 = vector.load %arg7[%c0_13, %c0_14] : memref<4x1xf32, #tpu.memory_space<vmem>>, vector<4x1xf32>
    %22 = arith.mulf %21, %20 : vector<4x1xf32>
    %cst_15 = arith.constant dense<0.000000e+00> : vector<4xf32>
    %23 = vector.multi_reduction <add>, %18, %cst_15 [1] : vector<4x64xf32> to vector<4xf32>
    %24 = vector.shape_cast %23 : vector<4xf32> to vector<4x1xf32>
    %25 = arith.addf %22, %24 : vector<4x1xf32>
    %c0_16 = arith.constant 0 : index
    %c0_17 = arith.constant 0 : index
    %26 = vector.load %arg7[%c0_16, %c0_17] : memref<4x1xf32, #tpu.memory_space<vmem>>, vector<4x1xf32>
    tpu.vector_store %arg7[%c0_16, %c0_17], %25 {strides = array<i32>} : memref<4x1xf32, #tpu.memory_space<vmem>>, vector<4x1xf32>,
    %cst_18 = arith.constant dense<0.000000e+00> : vector<4x16xf32>
    %27 = tpu.matmul %18, %11, %cst_18 {dimension_numbers = #tpu.dot_dimension_numbers<[1], [1], [0], [0], [0, 0, 1, 0], [], []>} : vector<4x64xf32>, vector<16x64xf32>, vector<4x16xf32> -> vector<4x16xf32>
    %c0_19 = arith.constant 0 : index
    %c0_20 = arith.constant 0 : index
    %28 = vector.load %arg8[%c0_19, %c0_20] : memref<4x16xf32, #tpu.memory_space<vmem>>, vector<4x16xf32>
    %29 = vector.broadcast %20 : vector<4x1xf32> to vector<4x16xf32>
    %30 = arith.mulf %28, %29 : vector<4x16xf32>
    %31 = arith.addf %30, %27 : vector<4x16xf32>
    %c0_21 = arith.constant 0 : index
    %c0_22 = arith.constant 0 : index
    %32 = vector.load %arg8[%c0_21, %c0_22] : memref<4x16xf32, #tpu.memory_space<vmem>>, vector<4x16xf32>
    tpu.vector_store %arg8[%c0_21, %c0_22], %31 {strides = array<i32>} : memref<4x16xf32, #tpu.memory_space<vmem>>, vector<4x16xf32>,
    %c0_23 = arith.constant 0 : index
    %c0_24 = arith.constant 0 : index
    %33 = vector.load %arg6[%c0_23, %c0_24] : memref<4x1xf32, #tpu.memory_space<vmem>>, vector<4x1xf32>
    tpu.vector_store %arg6[%c0_23, %c0_24], %15 {strides = array<i32>} : memref<4x1xf32, #tpu.memory_space<vmem>>, vector<4x1xf32>,
    %c0_i32_25 = arith.constant 0 : i32
    %34 = arith.cmpi eq, %arg2, %c0_i32_25 : i32
    %35 = arith.extui %34 : i1 to i32
    %c0_i32_26 = arith.constant 0 : i32
    %36 = arith.cmpi ne, %35, %c0_i32_26 : i32
    scf.if %36 {
      %c0_29 = arith.constant 0 : index
      %c0_30 = arith.constant 0 : index
      %c0_31 = arith.constant 0 : index
      %42 = vector.load %arg5[%c0_29, %c0_30, %c0_31] : memref<1x4x16xf32, #tpu.memory_space<vmem>>, vector<1x4x16xf32>
      %43 = vector.shape_cast %42 : vector<1x4x16xf32> to vector<4x16xf32>
      %c0_32 = arith.constant 0 : index
      %c0_33 = arith.constant 0 : index
      %44 = vector.load %arg8[%c0_32, %c0_33] : memref<4x16xf32, #tpu.memory_space<vmem>>, vector<4x16xf32>
      %c0_34 = arith.constant 0 : index
      %c0_35 = arith.constant 0 : index
      %45 = vector.load %arg7[%c0_34, %c0_35] : memref<4x1xf32, #tpu.memory_space<vmem>>, vector<4x1xf32>
      %cst_36 = arith.constant 1.000000e+00 : f32
      %46 = vector.broadcast %cst_36 : f32 to vector<4x1xf32>
      %47 = arith.divf %46, %45 : vector<4x1xf32>
      %48 = vector.broadcast %47 : vector<4x1xf32> to vector<4x16xf32>
      %49 = arith.mulf %44, %48 : vector<4x16xf32>
      %50 = arith.addf %43, %49 : vector<4x16xf32>
      %c0_37 = arith.constant 0 : index
      %c0_38 = arith.constant 0 : index
      %c0_39 = arith.constant 0 : index
      %51 = vector.load %arg5[%c0_37, %c0_38, %c0_39] : memref<1x4x16xf32, #tpu.memory_space<vmem>>, vector<1x4x16xf32>
      %52 = vector.shape_cast %51 : vector<1x4x16xf32> to vector<4x16xf32>
      %53 = vector.shape_cast %50 : vector<4x16xf32> to vector<1x4x16xf32>
      tpu.vector_store %arg5[%c0_37, %c0_38, %c0_39], %53 {strides = array<i32>} : memref<1x4x16xf32, #tpu.memory_space<vmem>>, vector<1x4x16xf32>,
    } else {
    }
    %c1_i32 = arith.constant 1 : i32
    %37 = arith.cmpi eq, %arg1, %c1_i32 : i32
    %c0_i32_27 = arith.constant 0 : i32
    %38 = arith.cmpi eq, %arg2, %c0_i32_27 : i32
    %39 = arith.andi %37, %38 : i1
    %40 = arith.extui %39 : i1 to i32
    %c0_i32_28 = arith.constant 0 : i32
    %41 = arith.cmpi ne, %40, %c0_i32_28 : i32
    scf.if %41 {
      %c0_29 = arith.constant 0 : index
      %c0_30 = arith.constant 0 : index
      %c0_31 = arith.constant 0 : index
      %42 = vector.load %arg5[%c0_29, %c0_30, %c0_31] : memref<1x4x16xf32, #tpu.memory_space<vmem>>, vector<1x4x16xf32>
      %43 = vector.shape_cast %42 : vector<1x4x16xf32> to vector<4x16xf32>
      %cst_32 = arith.constant 5.000000e-01 : f32
      %44 = vector.broadcast %cst_32 : f32 to vector<4x16xf32>
      %45 = arith.mulf %43, %44 : vector<4x16xf32>
      %c0_33 = arith.constant 0 : index
      %c0_34 = arith.constant 0 : index
      %c0_35 = arith.constant 0 : index
      %46 = vector.load %arg5[%c0_33, %c0_34, %c0_35] : memref<1x4x16xf32, #tpu.memory_space<vmem>>, vector<1x4x16xf32>
      %47 = vector.shape_cast %46 : vector<1x4x16xf32> to vector<4x16xf32>
      %48 = vector.shape_cast %45 : vector<4x16xf32> to vector<1x4x16xf32>
      tpu.vector_store %arg5[%c0_33, %c0_34, %c0_35], %48 {strides = array<i32>} : memref<1x4x16xf32, #tpu.memory_space<vmem>>, vector<1x4x16xf32>,
    } else {
    }
    return
  }
  func.func @transform_0(%arg0: i32, %arg1: i32, %arg2: i32) -> (i32, i32, i32, i32) {
    %c0_i32 = arith.constant 0 : i32
    %c0_i32_0 = arith.constant 0 : i32
    return %arg1, %arg0, %c0_i32, %arg2 : i32, i32, i32, i32
  }
  func.func @transform_1(%arg0: i32, %arg1: i32, %arg2: i32) -> (i32, i32, i32, i32) {
    %c0_i32 = arith.constant 0 : i32
    %c0_i32_0 = arith.constant 0 : i32
    return %arg1, %arg0, %c0_i32, %arg2 : i32, i32, i32, i32
  }
  func.func @transform_2(%arg0: i32, %arg1: i32, %arg2: i32) -> (i32, i32, i32) {
    %c0_i32 = arith.constant 0 : i32
    %c0_i32_0 = arith.constant 0 : i32
    %c0_i32_1 = arith.constant 0 : i32
    return %arg0, %c0_i32, %c0_i32_0 : i32, i32, i32
  }
}

</mosaic_0001>

<llo_original>
// kernel: tpu_custom_call.1
$region0: #{tpu_custom_call.1}
  #allocation0 [shape = 'u32[]', space=smem, size = 0x4, offset = 0x4, fixed_abs, tag = 'smem constant byte address 0x4 - core index']
  #allocation1 [shape = 'u32[144,128]{1,0:T(1,128)}', space=vmem, size = 0x12000, scoped, tag = 'internal scratch']
  #allocation2 [shape = 'f32[4,1]{1,0:T(4,128)}', space=vmem, size = 0x800, scoped, tag = 'scratch operand']
  #allocation3 [shape = 'f32[4,1]{1,0:T(4,128)}', space=vmem, size = 0x800, scoped, tag = 'scratch operand']
  #allocation4 [shape = 'f32[4,16]{1,0:T(4,128)}', space=vmem, size = 0x800, scoped, tag = 'scratch operand']
  %s0 = inlined_call_operand.hbm [shape: f32[2,2,4,64], index: 0, kind: input, shape index: {}]
  %s1 = inlined_call_operand.hbm [shape: f32[2,2,16,64], index: 1, kind: input, shape index: {}]
  %s2 = inlined_call_operand.hbm [shape: f32[2,4,16], index: 2, kind: output, shape index: {}]
  %s3 = sld [smem:[#allocation0]]
  $region65: #{tpu_custom_call.1} parent=0
    _
  %s5 = ssub.s32 1, %s3
  %s6 = scalar_select 0, %s5, %s3
  $region1: #{tpu_custom_call.1} parent=0
    #allocation5 [shape = 'u8[4096]{0}', space=vmem, size = 0x1000, scoped, tag = 'input window, operand 0']
    #allocation6 [shape = 's32[2]{0}', space=sflag, size = 0x8, scoped, tag = 'scoped memory for tpu_custom_call.1']
    #allocation7 [shape = 's32[2]{0}', space=sflag, size = 0x8, scoped, tag = 'scoped memory for tpu_custom_call.1']
    #allocation8 [shape = 'u8[16384]{0}', space=vmem, size = 0x4000, scoped, tag = 'input window, operand 1']
    #allocation9 [shape = 's32[2]{0}', space=sflag, size = 0x8, scoped, tag = 'scoped memory for tpu_custom_call.1']
    #allocation10 [shape = 'u8[4096]{0}', space=vmem, size = 0x1000, scoped, tag = 'output window, operand 0']
    %7 = vsyncpa [#allocation6], 0
    %s8 = scalar_lea.sflag [#allocation6], 1
    %9 = vsyncpa %s8, 0
    %10 = vsyncpa [#allocation9], 0
    %s11 = scalar_lea.sflag [#allocation9], 1
    %12 = vsyncpa %s11, 0
    %13 = vsyncpa [#allocation7], 0
    %s14 = scalar_lea.sflag [#allocation7], 1
    %15 = vsyncpa %s14, 0
    loop: start=0, step=1, limit=6
    $region2: #{tpu_custom_call.1} parent=1 // loop_pre_header
      _
    $region3: #{tpu_custom_call.1} parent=1 // loop_header
      %s17 = sphi 0, %s21
      %p18 = scmp.ge.s32.totalorder %s17, 6
      %s24 = sphi 0, %s43
      %s25 = sphi 0, %s39
      %s26 = sphi 0, %s35
      %s27 = sphi 0, %s24
      %s28 = sphi 0, %s25
      %s29 = sphi 0, %s26
      %s30 = sphi 0, %s27
      %s31 = sphi 0, %s28
      %s32 = sphi 0, %s29
      %s50 = sphi 0, %s52
      %s53 = sphi 0, %s50
      %s54 = sphi 0, %s53
      %s70 = sphi 0, %s54
      %s80 = sphi 0, %s82
      %s83 = sphi 0, %s80
      %s84 = sphi 0, %s83
      %s100 = sphi 0, %s84
      %s106 = sphi 0, %s108
      %s109 = sphi 0, %s106
      %s110 = sphi 0, %s109
      %s126 = sphi 0, %s110
    $region4: #{tpu_custom_call.1} parent=1 // loop_header_branch
      %20 = sbr.rel (%p18) target = $region8
    $region5: #{tpu_custom_call.1} parent=1 // loop_body
      %s22 = ssub.s32 %s17, 1
      %s23 = ssub.s32 %s17, 2
      %s33 = sadd.s32 1, %s26
      %p34 = scmp.ge.s32.totalorder %s33, 1
      %s35 = scalar_select %p34, 0, %s33
      %s36 = sadd.s32 1, %s25
      %s37 = scalar_select %p34, %s36, %s25
      %p38 = scmp.ge.s32.totalorder %s37, 2
      %s39 = scalar_select %p38, 0, %s37
      %s40 = sadd.s32 1, %s24
      %s41 = scalar_select %p38, %s40, %s24
      %p42 = scmp.ge.s32.totalorder %s41, 2
      %s43 = scalar_select %p42, 0, %s41
      %s44 = ssub.s32 %s25, %s39
      %s45 = ssub.s32 %s24, %s43
      %s46 = sor.u32 %s44, %s45
      %s47 = ssub.s32 %s26, %s35
      %s48 = sor.u32 %s46, %s47
      %p49 = scmp.eq.s32.totalorder %s48, 0
      %s51 = sadd.s32 %s50, 1
      %s52 = scalar_select %p49, %s50, %s51
      %p55 = pneg %p49
      %p56 = scmp.eq.s32.totalorder %s17, 3
      %p57 = por %p55, %p56
      %p58 = scmp.ne.s32.totalorder %s50, %s53
      %p59 = scmp.eq.s32.totalorder %s17, 0
      %p60 = por %p58, %p59
      %p61 = scmp.ne.s32.totalorder %s50, %s53
      %p62 = scmp.eq.s32.totalorder %s22, 3
      %p63 = por %p61, %p62
      %p64 = scmp.ne.s32.totalorder %s53, %s54
      %p65 = scmp.eq.s32.totalorder %s22, 0
      %p66 = por %p64, %p65
      %p67 = scmp.ne.s32.totalorder %s53, %s54
      %p68 = scmp.eq.s32.totalorder %s23, 3
      %p69 = por %p67, %p68
      %p71 = scmp.ne.s32.totalorder %s54, %s70
      %p72 = scmp.eq.s32.totalorder %s23, 0
      %p73 = por %p71, %p72
      %s74 = ssub.s32 %s25, %s39
      %s75 = ssub.s32 %s24, %s43
      %s76 = sor.u32 %s74, %s75
      %s77 = ssub.s32 %s26, %s35
      %s78 = sor.u32 %s76, %s77
      %p79 = scmp.eq.s32.totalorder %s78, 0
      %s81 = sadd.s32 %s80, 1
      %s82 = scalar_select %p79, %s80, %s81
      %p85 = pneg %p79
      %p86 = scmp.eq.s32.totalorder %s17, 3
      %p87 = por %p85, %p86
      %p88 = scmp.ne.s32.totalorder %s80, %s83
      %p89 = scmp.eq.s32.totalorder %s17, 0
      %p90 = por %p88, %p89
      %p91 = scmp.ne.s32.totalorder %s80, %s83
      %p92 = scmp.eq.s32.totalorder %s22, 3
      %p93 = por %p91, %p92
      %p94 = scmp.ne.s32.totalorder %s83, %s84
      %p95 = scmp.eq.s32.totalorder %s22, 0
      %p96 = por %p94, %p95
      %p97 = scmp.ne.s32.totalorder %s83, %s84
      %p98 = scmp.eq.s32.totalorder %s23, 3
      %p99 = por %p97, %p98
      %p101 = scmp.ne.s32.totalorder %s84, %s100
      %p102 = scmp.eq.s32.totalorder %s23, 0
      %p103 = por %p101, %p102
      %s104 = ssub.s32 %s24, %s43
      %p105 = scmp.eq.s32.totalorder %s104, 0
      %s107 = sadd.s32 %s106, 1
      %s108 = scalar_select %p105, %s106, %s107
      %p111 = pneg %p105
      %p112 = scmp.eq.s32.totalorder %s17, 3
      %p113 = por %p111, %p112
      %p114 = scmp.ne.s32.totalorder %s106, %s109
      %p115 = scmp.eq.s32.totalorder %s17, 0
      %p116 = por %p114, %p115
      %p117 = scmp.ne.s32.totalorder %s106, %s109
      %p118 = scmp.eq.s32.totalorder %s22, 3
      %p119 = por %p117, %p118
      %p120 = scmp.ne.s32.totalorder %s109, %s110
      %p121 = scmp.eq.s32.totalorder %s22, 0
      %p122 = por %p120, %p121
      %p123 = scmp.ne.s32.totalorder %s109, %s110
      %p124 = scmp.eq.s32.totalorder %s23, 3
      %p125 = por %p123, %p124
      %p127 = scmp.ne.s32.totalorder %s110, %s126
      %p128 = scmp.eq.s32.totalorder %s23, 0
      %p129 = por %p127, %p128
      %p130 = scmp.le.s32.totalorder 1, %s17
      %p131 = scmp.lt.s32.totalorder %s17, 5
      %p132 = pnand %p130, %p131
      %p133 = pneg %p132
      // Predicated region
      $region9: #{tpu_custom_call.1} parent=5 // pred_check
        _
      $region10: #{tpu_custom_call.1} parent=5 // pred_check_branch
        %135 = sbr.rel (%p132) target = $region12
      $region11: #{tpu_custom_call.1} parent=5 // pred_region
        %s136 = ssub.s32 %s17, 1
      $region12: #{tpu_custom_call.1} parent=5 // pred_fallthru
        _
      %p137 = scmp.lt.s32.totalorder %s17, 4
      // Predicated region
      $region13: #{tpu_custom_call.1} parent=5 // pred_check
        %p138 = pneg %p137
      $region14: #{tpu_custom_call.1} parent=5 // pred_check_branch
        %140 = sbr.rel (%p138) target = $region16
      $region15: #{tpu_custom_call.1} parent=5 // pred_region
        // Predicated region
        $region17: #{tpu_custom_call.1} parent=15 // pred_check
          %p141 = pneg %p60
        $region18: #{tpu_custom_call.1} parent=15 // pred_check_branch
          %143 = sbr.rel (%p141) target = $region20
        $region19: #{tpu_custom_call.1} parent=15 // pred_region
          %s144 = sand.u32 %s50, 1
          %s145 = scalar_lea.sflag [#allocation6], %s144
          %s146 = sand.u32 %s50, 1
          %s147 = smul.addr %s146, 4
          %s148 = scalar_lea.vmem [#allocation5], %s147
          %s150 = ssub.s32 64, 64
          %151 = vsyncadd %s145, %s150
          %s152 = sadd.s32 %s26, %s24
          %s153 = smul.addr %s25, 2
          %s154 = sadd.s32 %s152, %s153
          %s155 = smul.addr %s154, 64
          %s156 = scalar_lea.hbm %s0, %s155
          %s158 = sshll.u32 %s148, 4
          %s159 = int_to_ptr.vmem [resolvable:$true] %s158
          %161 = dma.hbm_to_vmem [thread:$0]  %s156, 64, %s159, %s145
        $region20: #{tpu_custom_call.1} parent=15 // pred_fallthru
          _
        // Predicated region
        $region21: #{tpu_custom_call.1} parent=15 // pred_check
          %p162 = pneg %p90
        $region22: #{tpu_custom_call.1} parent=15 // pred_check_branch
          %164 = sbr.rel (%p162) target = $region24
        $region23: #{tpu_custom_call.1} parent=15 // pred_region
          %s165 = sand.u32 %s80, 1
          %s166 = scalar_lea.sflag [#allocation9], %s165
          %s167 = sand.u32 %s80, 1
          %s168 = smul.addr %s167, 16
          %s169 = scalar_lea.vmem [#allocation8], %s168
          %s171 = ssub.s32 256, 256
          %172 = vsyncadd %s166, %s171
          %s173 = smul.addr %s24, 2
          %s174 = sadd.s32 %s26, %s173
          %s175 = smul.addr %s25, 4
          %s176 = sadd.s32 %s174, %s175
          %s177 = smul.addr %s176, 128
          %s178 = scalar_lea.hbm %s1, %s177
          %s179 = sshll.u32 %s169, 4
          %s180 = int_to_ptr.vmem [resolvable:$true] %s179
          %185 = dma.hbm_to_vmem [thread:$0]  %s178, 256, %s180, %s166, 128, 128, 8
        $region24: #{tpu_custom_call.1} parent=15 // pred_fallthru
          _
      $region16: #{tpu_custom_call.1} parent=5 // pred_fallthru
        _
      %p186 = scmp.le.s32.totalorder 1, %s17
      %p187 = scmp.lt.s32.totalorder %s17, 5
      %p188 = pnand %p186, %p187
      %p189 = pneg %p188
      // Predicated region
      $region25: #{tpu_custom_call.1} parent=5 // pred_check
        _
      $region26: #{tpu_custom_call.1} parent=5 // pred_check_branch
        %191 = sbr.rel (%p188) target = $region28
      $region27: #{tpu_custom_call.1} parent=5 // pred_region
        %s192 = ssub.s32 %s17, 1
        %s193 = sand.u32 %s53, 1
        %s194 = scalar_lea.sflag [#allocation6], %s193
        %s195 = sand.u32 %s53, 1
        %s196 = smul.addr %s195, 4
        %s197 = scalar_lea.vmem [#allocation5], %s196
        // Predicated region
        $region29: #{tpu_custom_call.1} parent=27 // pred_check
          %p198 = pneg %p66
        $region30: #{tpu_custom_call.1} parent=27 // pred_check_branch
          %200 = sbr.rel (%p198) target = $region32
        $region31: #{tpu_custom_call.1} parent=27 // pred_region
          %201 = dma.done %s194, 64
        $region32: #{tpu_custom_call.1} parent=27 // pred_fallthru
          _
        %s202 = sand.u32 %s83, 1
        %s203 = scalar_lea.sflag [#allocation9], %s202
        %s204 = sand.u32 %s83, 1
        %s205 = smul.addr %s204, 16
        %s206 = scalar_lea.vmem [#allocation8], %s205
        // Predicated region
        $region33: #{tpu_custom_call.1} parent=27 // pred_check
          %p207 = pneg %p96
        $region34: #{tpu_custom_call.1} parent=27 // pred_check_branch
          %209 = sbr.rel (%p207) target = $region36
        $region35: #{tpu_custom_call.1} parent=27 // pred_region
          %210 = dma.done %s203, 256
        $region36: #{tpu_custom_call.1} parent=27 // pred_fallthru
          _
        %s211 = sand.u32 %s53, 1
        %s212 = scalar_lea.sflag [#allocation6], %s211
        %s213 = sand.u32 %s53, 1
        %s214 = smul.addr %s213, 4
        %s215 = scalar_lea.vmem [#allocation5], %s214
        %p216 = pneg %p66
        %p217 = pneg %p63
        %s218 = sand.u32 %s83, 1
        %s219 = scalar_lea.sflag [#allocation9], %s218
        %s220 = sand.u32 %s83, 1
        %s221 = smul.addr %s220, 16
        %s222 = scalar_lea.vmem [#allocation8], %s221
        %p223 = pneg %p96
        %p224 = pneg %p93
        %p225 = pneg %p122
        %p226 = pneg %p119
        %s227 = sand.u32 %s109, 1
        %s228 = scalar_lea.sflag [#allocation7], %s227
        %s229 = sand.u32 %s109, 1
        %s230 = smul.addr %s229, 4
        %s231 = scalar_lea.vmem [#allocation10], %s230
        %p232 = scmp.eq.s32.totalorder %s28, 0
        %p233 = scmp.eq.s32.totalorder %s29, 0
        %p234 = pnand %p232, %p233
        %p235 = pneg %p234
        // Predicated region
        $region37: #{tpu_custom_call.1} parent=27 // pred_check
          _
        $region38: #{tpu_custom_call.1} parent=27 // pred_check_branch
          %237 = sbr.rel (%p234) target = $region40
        $region39: #{tpu_custom_call.1} parent=27 // pred_region
          %vm238 = vcmask 125952
          %239 = vst.msk [vmem:[%s231] sm:$0xf] %vm238, 0.0
        $region40: #{tpu_custom_call.1} parent=27 // pred_fallthru
          _
        // Predicated region
        $region41: #{tpu_custom_call.1} parent=27 // pred_check
          %p240 = pneg %p233
        $region42: #{tpu_custom_call.1} parent=27 // pred_check_branch
          %242 = sbr.rel (%p240) target = $region44
        $region43: #{tpu_custom_call.1} parent=27 // pred_region
          %vm243 = vcmask 3072
          %244 = vst.msk [vmem:[#allocation2] sm:$0xf] %vm243, -inf
          %245 = vst.msk [vmem:[#allocation3] sm:$0xf] %vm243, 0.0
          %vm246 = vcmask 125952
          %247 = vst.msk [vmem:[#allocation4] sm:$0xf] %vm246, 0.0
        $region44: #{tpu_custom_call.1} parent=27 // pred_fallthru
          _
        %v248 = vld [vmem:[%s197] sm:$0xf]
        %v249 = vld [vmem:[%s206] sm:$0xff]
        %v250 = vld [vmem:[%s206 + $0x8] sm:$0xff]
        %v251 = vld [vmem:[#allocation2] sm:$0xf]
        %vm252 = vcmask 519168
        %v253 = vsel %vm252, %v248, -inf
        %254 = vmax.xlane.f32.xlu0 %v253
        %v255 = vpop.xlane.xlu0 %254
        %v256 = vmax.f32 %v251, %v255
        %258 = vset.pattern.permute.xlu0 0
        %259 = vperm.xlu0 %258, %v256
        %v260 = vpop.permute.xlu0 %259
        %v262 = vsub.f32 %v248, %v260
        %v263 = vmul.f32 %v262, 1.442695
        %v264 = vpow.pop %v263
        %v265 = vsub.f32 %v251, %v256
        %v266 = vmul.f32 %v265, 1.442695
        %v267 = vpow.pop %v266
        %v268 = vld [vmem:[#allocation3] sm:$0xf]
        %v269 = vmul.f32 %v268, %v267
        %v270 = vsel %vm252, %v264, 0.0
        %271 = vadd.xlane.f32.xlu0 %v270
        %v272 = vpop.xlane.xlu0 %271
        %v273 = vadd.f32 %v269, %v272
        %vm274 = vcmask 3072
        %275 = vst.msk [vmem:[#allocation3] sm:$0xf] %vm274, %v273
        %vm276 = vcmask 523264
        %v278 = vsel %vm276, %v264, 0
        %v281 = vsel %vm276, %v249, 0
        %v284 = vsel %vm276, %v250, 0
        %286 = vmatprep.subr.mxu0 0.0
        %287 = vmatpush1.xpose.msra.mxu0 0.0
        %288 = vmatprep.subr.mxu0 0.0
        %289 = vmatpush1.xpose.msra.mxu0 0.0
        %290 = vmatprep.subr.mxu0 0.0
        %291 = vmatpush1.xpose.msra.mxu0 0.0
        %292 = vmatprep.subr.mxu0 0.0
        %293 = vmatpush1.xpose.msra.mxu0 0.0
        %294 = vmatprep.subr.mxu0 0.0
        %295 = vmatpush1.xpose.msra.mxu0 0.0
        %296 = vmatprep.subr.mxu0 0.0
        %297 = vmatpush1.xpose.msra.mxu0 0.0
        %298 = vmatprep.subr.mxu0 0.0
        %299 = vmatpush1.xpose.msra.mxu0 0.0
        %300 = vmatprep.subr.mxu0 0.0
        %301 = vmatpush1.xpose.msra.mxu0 0.0
        %302 = vmatprep.subr.mxu0 0.0
        %303 = vmatpush1.xpose.msra.mxu0 0.0
        %304 = vmatprep.subr.mxu0 0.0
        %305 = vmatpush1.xpose.msra.mxu0 0.0
        %306 = vmatprep.subr.mxu0 0.0
        %307 = vmatpush1.xpose.msra.mxu0 0.0
        %308 = vmatprep.subr.mxu0 0.0
        %309 = vmatpush1.xpose.msra.mxu0 0.0
        %310 = vmatprep.subr.mxu0 0.0
        %311 = vmatpush1.xpose.msra.mxu0 0.0
        %312 = vmatprep.subr.mxu0 0.0
        %313 = vmatpush1.xpose.msra.mxu0 0.0
        %314 = vmatprep.subr.mxu0 0.0
        %315 = vmatpush1.xpose.msra.mxu0 %v284
        %316 = vmatprep.subr.mxu0 0.0
        %317 = vmatpush1.xpose.msra.mxu0 %v281
        %318 = vmatprep.subr.mxu0 0.0
        %319 = vmatpush2.xpose.msra.mxu0 0.0
        %320 = vmatprep.subr.mxu0 0.0
        %321 = vmatpush2.xpose.msra.mxu0 0.0
        %322 = vmatprep.subr.mxu0 0.0
        %323 = vmatpush2.xpose.msra.mxu0 0.0
        %324 = vmatprep.subr.mxu0 0.0
        %325 = vmatpush2.xpose.msra.mxu0 0.0
        %326 = vmatprep.subr.mxu0 0.0
        %327 = vmatpush2.xpose.msra.mxu0 0.0
        %328 = vmatprep.subr.mxu0 0.0
        %329 = vmatpush2.xpose.msra.mxu0 0.0
        %330 = vmatprep.subr.mxu0 0.0
        %331 = vmatpush2.xpose.msra.mxu0 0.0
        %332 = vmatprep.subr.mxu0 0.0
        %333 = vmatpush2.xpose.msra.mxu0 0.0
        %334 = vmatprep.subr.mxu0 0.0
        %335 = vmatpush2.xpose.msra.mxu0 0.0
        %336 = vmatprep.subr.mxu0 0.0
        %337 = vmatpush2.xpose.msra.mxu0 0.0
        %338 = vmatprep.subr.mxu0 0.0
        %339 = vmatpush2.xpose.msra.mxu0 0.0
        %340 = vmatprep.subr.mxu0 0.0
        %341 = vmatpush2.xpose.msra.mxu0 0.0
        %342 = vmatprep.subr.mxu0 0.0
        %343 = vmatpush2.xpose.msra.mxu0 0.0
        %344 = vmatprep.subr.mxu0 0.0
        %345 = vmatpush2.xpose.msra.mxu0 0.0
        %346 = vmatprep.subr.mxu0 0.0
        %347 = vmatpush2.xpose.msra.mxu0 0.0
        %348 = vmatprep.subr.mxu0 0.0
        %349 = vmatpush2.xpose.msra.mxu0 0.0
        %350 = vmatprep.mubr.f32.mxu0 0.0
        %351 = vmatmul.mubr.f32.gmra.mxu0 %v278
        %v352 = vpop.f32.mrf.mxu0
        %v353 = vadd.f32 0.0, %v352
        %v354 = vpop.f32.mrf.mxu0
        %355 = vdwg.mxu0
        %v356 = vld [vmem:[#allocation4] sm:$0xf]
        %358 = vset.pattern.permute.xlu0 0
        %359 = vperm.xlu0 %358, %v267
        %v360 = vpop.permute.xlu0 %359
        %v362 = vmul.f32 %v356, %v360
        %v363 = vadd.f32 %v362, %v353
        %vm364 = vcmask 125952
        %365 = vst.msk [vmem:[#allocation4] sm:$0xf] %vm364, %v363
        %366 = vst.msk [vmem:[#allocation2] sm:$0xf] %vm274, %v256
        // Predicated region
        $region45: #{tpu_custom_call.1} parent=27 // pred_check
          %p367 = pneg %p233
        $region46: #{tpu_custom_call.1} parent=27 // pred_check_branch
          %369 = sbr.rel (%p367) target = $region48
        $region47: #{tpu_custom_call.1} parent=27 // pred_region
          %v370 = vld [vmem:[%s231] sm:$0xf]
          %v371 = vld [vmem:[#allocation4] sm:$0xf]
          %v372 = vld [vmem:[#allocation3] sm:$0xf]
          %v373 = vrcp.pop %v372
          %v374 = vmul.f32 1.0, %v373
          %376 = vset.pattern.permute.xlu0 0
          %377 = vperm.xlu0 %376, %v374
          %v378 = vpop.permute.xlu0 %377
          %v380 = vmul.f32 %v371, %v378
          %v381 = vadd.f32 %v370, %v380
          %382 = vst.msk [vmem:[%s231] sm:$0xf] %vm364, %v381
        $region48: #{tpu_custom_call.1} parent=27 // pred_fallthru
          _
        %p383 = scmp.eq.s32.totalorder %s28, 1
        %p384 = pnand %p383, %p233
        %p385 = pneg %p384
        // Predicated region
        $region49: #{tpu_custom_call.1} parent=27 // pred_check
          _
        $region50: #{tpu_custom_call.1} parent=27 // pred_check_branch
          %387 = sbr.rel (%p384) target = $region52
        $region51: #{tpu_custom_call.1} parent=27 // pred_region
          %v388 = vld [vmem:[%s231] sm:$0xf]
          %v389 = vmul.f32 %v388, 0.5
          %390 = vst.msk [vmem:[%s231] sm:$0xf] %vm364, %v389
        $region52: #{tpu_custom_call.1} parent=27 // pred_fallthru
          _
        %s391 = sand.u32 %s109, 1
        %s392 = scalar_lea.sflag [#allocation7], %s391
        %s393 = sand.u32 %s109, 1
        %s394 = smul.addr %s393, 4
        %s395 = scalar_lea.vmem [#allocation10], %s394
        // Predicated region
        $region53: #{tpu_custom_call.1} parent=27 // pred_check
          %p396 = pneg %p119
        $region54: #{tpu_custom_call.1} parent=27 // pred_check_branch
          %398 = sbr.rel (%p396) target = $region56
        $region55: #{tpu_custom_call.1} parent=27 // pred_region
          %s400 = ssub.s32 64, 64
          %401 = vsyncadd %s392, %s400
          %s402 = smul.addr %s27, 64
          %s403 = scalar_lea.hbm %s2, %s402
          %s405 = sshll.u32 %s395, 4
          %s406 = int_to_ptr.vmem [resolvable:$true] %s405
          %408 = dma.vmem_to_hbm [thread:$0]  %s406, 64, %s403, %s392
        $region56: #{tpu_custom_call.1} parent=27 // pred_fallthru
          _
      $region28: #{tpu_custom_call.1} parent=5 // pred_fallthru
        _
      %p409 = scmp.le.s32.totalorder 2, %s17
      // Predicated region
      $region57: #{tpu_custom_call.1} parent=5 // pred_check
        %p410 = pneg %p409
      $region58: #{tpu_custom_call.1} parent=5 // pred_check_branch
        %412 = sbr.rel (%p410) target = $region60
      $region59: #{tpu_custom_call.1} parent=5 // pred_region
        %s413 = ssub.s32 %s17, 2
        // Predicated region
        $region61: #{tpu_custom_call.1} parent=59 // pred_check
          %p414 = pneg %p125
        $region62: #{tpu_custom_call.1} parent=59 // pred_check_branch
          %416 = sbr.rel (%p414) target = $region64
        $region63: #{tpu_custom_call.1} parent=59 // pred_region
          %s417 = sand.u32 %s110, 1
          %s418 = scalar_lea.sflag [#allocation7], %s417
          %s419 = sand.u32 %s110, 1
          %s420 = smul.addr %s419, 4
          %s421 = scalar_lea.vmem [#allocation10], %s420
          %422 = dma.done %s418, 64
        $region64: #{tpu_custom_call.1} parent=59 // pred_fallthru
          _
      $region60: #{tpu_custom_call.1} parent=5 // pred_fallthru
        _
    $region6: #{tpu_custom_call.1} parent=1 // loop_footer
      %s21 = sadd.s32 1, %s17
    $region7: #{tpu_custom_call.1} parent=1 // loop_footer_branch
      %16 = sbr.rel target = $region3
    $region8: #{tpu_custom_call.1} parent=1 // loop_exit
      _
    %423 = vsyncpa [#allocation6], 1
    %s424 = scalar_lea.sflag [#allocation6], 1
    %425 = vsyncpa %s424, 1
    %426 = vsyncpa [#allocation9], 1
    %s427 = scalar_lea.sflag [#allocation9], 1
    %428 = vsyncpa %s427, 1
    %429 = vsyncpa [#allocation7], 1
    %s430 = scalar_lea.sflag [#allocation7], 1
    %431 = vsyncpa %s430, 1

</llo_original>
